<compile_context>
chip_gen: v7x
topology: tpu7x:2x2x1
jax: 0.10.0
libtpu: 0.0.40
codegen_flags: <defaults>
</compile_context>

<pallas_src>
import functools

import jax
import jax.numpy as jnp
from jax.experimental import pallas as pl
from jax.experimental.pallas import tpu as pltpu


def _rtfm_loss_kernel(sl_ref, feat_n_ref, feat_a_ref, out_ref, acc_ref, *,
                      margin, T, F, B, block_b, n_scores):
    c = pl.program_id(0)            # TensorCore-split axis ("parallel")
    s = pl.program_id(1)            # batch-block reduction axis ("arbitrary")
    n_steps = pl.num_programs(1)

    @pl.when(s == 0)
    def _init():
        acc_ref[...] = jnp.zeros_like(acc_ref)

    # ---- temporal mean: fused bf16/f32 cast + reduce over T static slices ----
    # feat refs are (block_b, T*F) in their native dtype; each slice is
    # lane-aligned (F is typically a multiple of 128) and consumed immediately
    # into an f32 accumulator -> no full f32 copy of the tile.
    inv_t = jnp.float32(1.0 / T)

    def temporal_mean(ref):
        acc = ref[:, 0:F].astype(jnp.float32)
        for t in range(1, T):
            acc = acc + ref[:, t * F:(t + 1) * F].astype(jnp.float32)
        return acc * inv_t                                   # (block_b, F) f32

    mean_n = temporal_mean(feat_n_ref)
    mean_a = temporal_mean(feat_a_ref)

    norm_n = jnp.sqrt(jnp.sum(mean_n * mean_n, axis=-1, keepdims=True))  # (Bb,1)
    norm_a = jnp.sqrt(jnp.sum(mean_a * mean_a, axis=-1, keepdims=True))  # (Bb,1)

    per_item = (jnp.abs(jnp.float32(margin) - norm_a) + norm_n) ** 2     # (Bb,1)

    # Mask rows that fall past B (partial tail block / clamped duplicate block).
    row0 = (c * n_steps + s) * block_b
    rows = row0 + jax.lax.broadcasted_iota(jnp.int32, per_item.shape, 0)
    per_item = jnp.where(rows < B, per_item, 0.0)

    # Per-step accumulation stays vector-shaped (no cross-sublane reduce here).
    acc_ref[...] += per_item

    # ---- finalize at the last reduction step of this core ---------------------
    @pl.when(s == n_steps - 1)
    def _finalize():
        rtfm_partial = jnp.sum(acc_ref[...])   # single cross-sublane reduce

        # BCE classification loss (PyTorch BCELoss semantics: clamp log terms
        # at -100 before weighting, mean over all 2B).  It touches only a tiny
        # (4, B) resident tile and is fully hidden under the feature DMA, so it
        # is recomputed on each core's final step to keep a single store.
        sl = sl_ref[...]                        # (4, B) f32: [sn, sa, nl, al]
        scores = sl[0:2, :]
        labels = sl[2:4, :]
        log_p = jnp.maximum(jnp.log(scores), -100.0)
        log_1mp = jnp.maximum(jnp.log(1.0 - scores), -100.0)
        loss_cls = jnp.sum(-(labels * log_p + (1.0 - labels) * log_1mp)) / n_scores

        # Single unmasked lane-dense store: lane 0 = this core's RTFM partial
        # sum, lane 1 = BCE loss (only row 0 is consumed by the wrapper).
        lane = jax.lax.broadcasted_iota(jnp.int32, out_ref.shape, 2)
        out_ref[...] = jnp.where(lane == 0, rtfm_partial,
                       jnp.where(lane == 1, loss_cls, 0.0)).astype(jnp.float32)


def _vmem_limit_bytes():
    """~75% of physical VMEM: ~96 MiB on v5e/v6e (128 MiB), ~48 MiB on v7x (64 MiB)."""
    cap = 64 * 1024 * 1024
    try:
        cap = int(pltpu.get_tpu_info().vmem_capacity_bytes)
    except Exception:
        pass
    if cap <= 0:
        cap = 64 * 1024 * 1024
    return (cap * 3) // 4


def _pick_batch_block(B, T, F, itemsize, budget_bytes):
    """Largest batch block whose buffers + reduce temps fit the VMEM budget."""
    # Per batch row: 2 feature tensors x 2 pipeline buffers of T*F native-dtype
    # elements (DMA double-buffering) + ~3 live f32 (F,) temporaries for the
    # fused cast/reduce.
    per_row = 4 * T * F * itemsize + 3 * F * 4
    fit = max(1, budget_bytes // per_row)
    block_b = min(fit, B)
    if B >= 16:
        # Leave room to split the batch across two TensorCores (v7x).
        block_b = min(block_b, -(-B // 2))
    if block_b < B:
        block_b = max(8, (block_b // 8) * 8)   # keep partial blocks sublane-aligned
        block_b = min(block_b, B)
    return block_b


def rtfm_loss(score_normal, score_abnormal, nlabel, alabel, feat_n, feat_a,
              *, alpha, margin, block_b=None):
    """Returns (loss_total, loss_cls, loss_rtfm) as float32 scalars."""
    B, T, F = feat_n.shape
    assert feat_a.shape == (B, T, F)

    # Pack the four tiny score/label vectors into one (4, B) f32 tile
    # (one resident DMA instead of four; casting B scalars here is negligible).
    sl = jnp.stack([
        score_normal.reshape(-1).astype(jnp.float32),
        score_abnormal.reshape(-1).astype(jnp.float32),
        nlabel.reshape(-1).astype(jnp.float32),
        alabel.reshape(-1).astype(jnp.float32),
    ], axis=0)
    assert sl.shape == (4, B)
    n_scores = 2 * B

    # (B, T, F) -> (B, T*F): free contiguous view; avoids sublane padding of the
    # small T axis and keeps feature tiles vreg-dense.  Features stay in their
    # native dtype (bf16/f32); the cast happens inside the fused reduce.
    fn2 = feat_n.reshape(B, T * F)
    fa2 = feat_a.reshape(B, T * F)

    vmem_limit = _vmem_limit_bytes()
    if block_b is None:
        feat_budget = max(vmem_limit - 4 * 1024 * 1024, 4 * 1024 * 1024)
        block_b = _pick_batch_block(B, T, F, jnp.dtype(feat_n.dtype).itemsize,
                                    feat_budget)

    n_blocks = pl.cdiv(B, block_b)
    split = 2 if n_blocks >= 2 else 1          # shard batch over both TCs on v7x
    n_steps = pl.cdiv(n_blocks, split)

    def feat_index(c, s):
        blk = c * n_steps + s
        # Clamp: a fully out-of-range tail block re-reads the last valid block;
        # its rows are zeroed in-kernel by the global-row mask.
        return (jnp.minimum(blk, n_blocks - 1), 0)

    kernel = functools.partial(
        _rtfm_loss_kernel, margin=float(margin), T=T, F=F, B=B,
        block_b=block_b, n_scores=float(n_scores))

    out = pl.pallas_call(
        kernel,
        out_shape=jax.ShapeDtypeStruct((split, 8, 128), jnp.float32),
        grid_spec=pltpu.PrefetchScalarGridSpec(
            num_scalar_prefetch=0,
            grid=(split, n_steps),
            in_specs=[
                pl.BlockSpec((4, B), lambda c, s: (0, 0)),          # packed scores
                pl.BlockSpec((block_b, T * F), feat_index),          # feat_n
                pl.BlockSpec((block_b, T * F), feat_index),          # feat_a
            ],
            out_specs=pl.BlockSpec((1, 8, 128), lambda c, s: (c, 0, 0)),
            scratch_shapes=[pltpu.VMEM((block_b, 1), jnp.float32)],
        ),
        compiler_params=pltpu.CompilerParams(
            dimension_semantics=("parallel", "arbitrary"),
            vmem_limit_bytes=int(vmem_limit)),
    )(sl, fn2, fa2)

    # Combine the per-core partials (tiny scalar ops).
    loss_rtfm = jnp.sum(out[:, 0, 0]) / jnp.float32(B)
    loss_cls = out[0, 0, 1]
    loss_total = loss_cls + jnp.float32(alpha) * loss_rtfm
    return loss_total, loss_cls, loss_rtfm


def _reference(score_normal, score_abnormal, nlabel, alabel, feat_n, feat_a,
               *, alpha, margin):
    score = jnp.concatenate(
        [score_normal.reshape(-1), score_abnormal.reshape(-1)], axis=0)
    label = jnp.concatenate([nlabel.reshape(-1), alabel.reshape(-1)], axis=0)
    score = score.astype(jnp.float32)
    label = label.astype(jnp.float32)
    log_p = jnp.maximum(jnp.log(score), -100.0)
    log_1mp = jnp.maximum(jnp.log(1.0 - score), -100.0)
    loss_cls = jnp.mean(-(label * log_p + (1.0 - label) * log_1mp))
    fa = feat_a.astype(jnp.float32)
    fn = feat_n.astype(jnp.float32)
    norm_a = jnp.linalg.norm(jnp.mean(fa, axis=1), axis=1)
    norm_n = jnp.linalg.norm(jnp.mean(fn, axis=1), axis=1)
    loss_abn = jnp.abs(margin - norm_a)
    loss_rtfm = jnp.mean((loss_abn + norm_n) ** 2)
    return loss_cls + alpha * loss_rtfm, loss_cls, loss_rtfm


if __name__ == "__main__":
    # Small but lane-dense shapes: batch=2, top-k temporal segments=8,
    # feature dim=128 (multiple of the 128-lane vreg width).
    B, T, F = 2, 8, 128
    alpha, margin = 0.0001, 100.0

    key = jax.random.PRNGKey(0)
    k1, k2, k3, k4 = jax.random.split(key, 4)

    # Scores are sigmoid outputs -> in (0, 1).
    score_normal = jax.nn.sigmoid(jax.random.normal(k1, (B, 1), jnp.float32))
    score_abnormal = jax.nn.sigmoid(jax.random.normal(k2, (B, 1), jnp.float32))
    nlabel = jnp.zeros((B,), jnp.float32)
    alabel = jnp.ones((B,), jnp.float32)
    feat_n = jax.random.normal(k3, (B, T, F), jnp.float32)
    feat_a = jax.random.normal(k4, (B, T, F), jnp.float32)

    loss_total, loss_cls, loss_rtfm = rtfm_loss(
        score_normal, score_abnormal, nlabel, alabel, feat_n, feat_a,
        alpha=alpha, margin=margin)
    jax.block_until_ready((loss_total, loss_cls, loss_rtfm))

    ref_total, ref_cls, ref_rtfm = _reference(
        score_normal, score_abnormal, nlabel, alabel, feat_n, feat_a,
        alpha=alpha, margin=margin)
    assert jnp.allclose(loss_total, ref_total, rtol=1e-5, atol=1e-5)
    assert jnp.allclose(loss_cls, ref_cls, rtol=1e-5, atol=1e-5)
    assert jnp.allclose(loss_rtfm, ref_rtfm, rtol=1e-5, atol=1e-5)

    print("KERNEL_OK")
</pallas_src>

<mosaic_0001>
module attributes {stable_mosaic.version = 11 : i64} {
  func.func @_rtfm_loss_kernel(%arg0: i32, %arg1: i32, %arg2: memref<4x2xf32, #tpu.memory_space<vmem>>, %arg3: memref<2x1024xf32, #tpu.memory_space<vmem>>, %arg4: memref<2x1024xf32, #tpu.memory_space<vmem>>, %arg5: memref<1x8x128xf32, #tpu.memory_space<vmem>>, %arg6: memref<2x1xf32, #tpu.memory_space<vmem>>) attributes {dimension_semantics = [#tpu.dimension_semantics<parallel>, #tpu.dimension_semantics<arbitrary>], iteration_bounds = array<i64: 1, 1>, scalar_prefetch = 0 : i64, scratch_operands = 1 : i64, tpu.core_type = #tpu.core_type<tc>, window_params = [{pipeline_mode = #tpu.pipeline_mode<synchronous>, transform_indices = @transform_0, window_bounds = array<i64: 4, 2>}, {transform_indices = @transform_1, window_bounds = array<i64: 2, 1024>}, {transform_indices = @transform_2, window_bounds = array<i64: 2, 1024>}, {transform_indices = @transform_3, window_bounds = array<i64: 1, 8, 128>}]} {
    %c0_i32 = arith.constant 0 : i32
    %0 = arith.cmpi eq, %arg1, %c0_i32 : i32
    %1 = arith.extui %0 : i1 to i32
    %c0_i32_0 = arith.constant 0 : i32
    %2 = arith.cmpi ne, %1, %c0_i32_0 : i32
    scf.if %2 {
      %cst_37 = arith.constant 0.000000e+00 : f32
      %66 = vector.broadcast %cst_37 : f32 to vector<2x1xf32>
      %c0_38 = arith.constant 0 : index
      %c0_39 = arith.constant 0 : index
      %67 = vector.load %arg6[%c0_38, %c0_39] : memref<2x1xf32, #tpu.memory_space<vmem>>, vector<2x1xf32>
      tpu.vector_store %arg6[%c0_38, %c0_39], %66 {strides = array<i32>} : memref<2x1xf32, #tpu.memory_space<vmem>>, vector<2x1xf32>,
    } else {
    }
    %c0 = arith.constant 0 : index
    %c0_1 = arith.constant 0 : index
    %3 = vector.load %arg3[%c0, %c0_1] : memref<2x1024xf32, #tpu.memory_space<vmem>>, vector<2x128xf32>
    %c0_2 = arith.constant 0 : index
    %c128 = arith.constant 128 : index
    %4 = vector.load %arg3[%c0_2, %c128] : memref<2x1024xf32, #tpu.memory_space<vmem>>, vector<2x128xf32>
    %5 = arith.addf %3, %4 : vector<2x128xf32>
    %c0_3 = arith.constant 0 : index
    %c256 = arith.constant 256 : index
    %6 = vector.load %arg3[%c0_3, %c256] : memref<2x1024xf32, #tpu.memory_space<vmem>>, vector<2x128xf32>
    %7 = arith.addf %5, %6 : vector<2x128xf32>
    %c0_4 = arith.constant 0 : index
    %c384 = arith.constant 384 : index
    %8 = vector.load %arg3[%c0_4, %c384] : memref<2x1024xf32, #tpu.memory_space<vmem>>, vector<2x128xf32>
    %9 = arith.addf %7, %8 : vector<2x128xf32>
    %c0_5 = arith.constant 0 : index
    %c512 = arith.constant 512 : index
    %10 = vector.load %arg3[%c0_5, %c512] : memref<2x1024xf32, #tpu.memory_space<vmem>>, vector<2x128xf32>
    %11 = arith.addf %9, %10 : vector<2x128xf32>
    %c0_6 = arith.constant 0 : index
    %c640 = arith.constant 640 : index
    %12 = vector.load %arg3[%c0_6, %c640] : memref<2x1024xf32, #tpu.memory_space<vmem>>, vector<2x128xf32>
    %13 = arith.addf %11, %12 : vector<2x128xf32>
    %c0_7 = arith.constant 0 : index
    %c768 = arith.constant 768 : index
    %14 = vector.load %arg3[%c0_7, %c768] : memref<2x1024xf32, #tpu.memory_space<vmem>>, vector<2x128xf32>
    %15 = arith.addf %13, %14 : vector<2x128xf32>
    %c0_8 = arith.constant 0 : index
    %c896 = arith.constant 896 : index
    %16 = vector.load %arg3[%c0_8, %c896] : memref<2x1024xf32, #tpu.memory_space<vmem>>, vector<2x128xf32>
    %17 = arith.addf %15, %16 : vector<2x128xf32>
    %cst = arith.constant 1.250000e-01 : f32
    %18 = vector.broadcast %cst : f32 to vector<2x128xf32>
    %19 = arith.mulf %17, %18 : vector<2x128xf32>
    %c0_9 = arith.constant 0 : index
    %c0_10 = arith.constant 0 : index
    %20 = vector.load %arg4[%c0_9, %c0_10] : memref<2x1024xf32, #tpu.memory_space<vmem>>, vector<2x128xf32>
    %c0_11 = arith.constant 0 : index
    %c128_12 = arith.constant 128 : index
    %21 = vector.load %arg4[%c0_11, %c128_12] : memref<2x1024xf32, #tpu.memory_space<vmem>>, vector<2x128xf32>
    %22 = arith.addf %20, %21 : vector<2x128xf32>
    %c0_13 = arith.constant 0 : index
    %c256_14 = arith.constant 256 : index
    %23 = vector.load %arg4[%c0_13, %c256_14] : memref<2x1024xf32, #tpu.memory_space<vmem>>, vector<2x128xf32>
    %24 = arith.addf %22, %23 : vector<2x128xf32>
    %c0_15 = arith.constant 0 : index
    %c384_16 = arith.constant 384 : index
    %25 = vector.load %arg4[%c0_15, %c384_16] : memref<2x1024xf32, #tpu.memory_space<vmem>>, vector<2x128xf32>
    %26 = arith.addf %24, %25 : vector<2x128xf32>
    %c0_17 = arith.constant 0 : index
    %c512_18 = arith.constant 512 : index
    %27 = vector.load %arg4[%c0_17, %c512_18] : memref<2x1024xf32, #tpu.memory_space<vmem>>, vector<2x128xf32>
    %28 = arith.addf %26, %27 : vector<2x128xf32>
    %c0_19 = arith.constant 0 : index
    %c640_20 = arith.constant 640 : index
    %29 = vector.load %arg4[%c0_19, %c640_20] : memref<2x1024xf32, #tpu.memory_space<vmem>>, vector<2x128xf32>
    %30 = arith.addf %28, %29 : vector<2x128xf32>
    %c0_21 = arith.constant 0 : index
    %c768_22 = arith.constant 768 : index
    %31 = vector.load %arg4[%c0_21, %c768_22] : memref<2x1024xf32, #tpu.memory_space<vmem>>, vector<2x128xf32>
    %32 = arith.addf %30, %31 : vector<2x128xf32>
    %c0_23 = arith.constant 0 : index
    %c896_24 = arith.constant 896 : index
    %33 = vector.load %arg4[%c0_23, %c896_24] : memref<2x1024xf32, #tpu.memory_space<vmem>>, vector<2x128xf32>
    %34 = arith.addf %32, %33 : vector<2x128xf32>
    %cst_25 = arith.constant 1.250000e-01 : f32
    %35 = vector.broadcast %cst_25 : f32 to vector<2x128xf32>
    %36 = arith.mulf %34, %35 : vector<2x128xf32>
    %37 = arith.mulf %19, %19 : vector<2x128xf32>
    %cst_26 = arith.constant dense<0.000000e+00> : vector<2xf32>
    %38 = vector.multi_reduction <add>, %37, %cst_26 [1] : vector<2x128xf32> to vector<2xf32>
    %39 = vector.shape_cast %38 : vector<2xf32> to vector<2x1xf32>
    %40 = math.sqrt %39 : vector<2x1xf32>
    %41 = arith.mulf %36, %36 : vector<2x128xf32>
    %cst_27 = arith.constant dense<0.000000e+00> : vector<2xf32>
    %42 = vector.multi_reduction <add>, %41, %cst_27 [1] : vector<2x128xf32> to vector<2xf32>
    %43 = vector.shape_cast %42 : vector<2xf32> to vector<2x1xf32>
    %44 = math.sqrt %43 : vector<2x1xf32>
    %cst_28 = arith.constant 1.000000e+02 : f32
    %45 = vector.broadcast %cst_28 : f32 to vector<2x1xf32>
    %46 = arith.subf %45, %44 : vector<2x1xf32>
    %47 = math.absf %46 : vector<2x1xf32>
    %48 = arith.addf %47, %40 : vector<2x1xf32>
    %49 = arith.mulf %48, %48 : vector<2x1xf32>
    %c1_i32 = arith.constant 1 : i32
    %50 = arith.muli %arg0, %c1_i32 : i32
    %51 = arith.addi %50, %arg1 : i32
    %c2_i32 = arith.constant 2 : i32
    %52 = arith.muli %51, %c2_i32 : i32
    %53 = tpu.iota {dimensions = array<i32: 0>} : vector<2x1xi32>
    %54 = vector.broadcast %52 : i32 to vector<2x1xi32>
    %55 = arith.addi %54, %53 : vector<2x1xi32>
    %c2_i32_29 = arith.constant 2 : i32
    %56 = vector.broadcast %c2_i32_29 : i32 to vector<2x1xi32>
    %57 = arith.cmpi slt, %55, %56 : vector<2x1xi32>
    %cst_30 = arith.constant 0.000000e+00 : f32
    %58 = vector.broadcast %cst_30 : f32 to vector<2x1xf32>
    %59 = arith.select %57, %49, %58 : vector<2x1xi1>, vector<2x1xf32>
    %c0_31 = arith.constant 0 : index
    %c0_32 = arith.constant 0 : index
    %60 = vector.load %arg6[%c0_31, %c0_32] : memref<2x1xf32, #tpu.memory_space<vmem>>, vector<2x1xf32>
    %61 = arith.addf %60, %59 : vector<2x1xf32>
    %c0_33 = arith.constant 0 : index
    %c0_34 = arith.constant 0 : index
    %62 = vector.load %arg6[%c0_33, %c0_34] : memref<2x1xf32, #tpu.memory_space<vmem>>, vector<2x1xf32>
    tpu.vector_store %arg6[%c0_33, %c0_34], %61 {strides = array<i32>} : memref<2x1xf32, #tpu.memory_space<vmem>>, vector<2x1xf32>,
    %c0_i32_35 = arith.constant 0 : i32
    %63 = arith.cmpi eq, %arg1, %c0_i32_35 : i32
    %64 = arith.extui %63 : i1 to i32
    %c0_i32_36 = arith.constant 0 : i32
    %65 = arith.cmpi ne, %64, %c0_i32_36 : i32
    scf.if %65 {
      %c0_37 = arith.constant 0 : index
      %c0_38 = arith.constant 0 : index
      %66 = vector.load %arg6[%c0_37, %c0_38] : memref<2x1xf32, #tpu.memory_space<vmem>>, vector<2x1xf32>
      %67 = vector.shape_cast %66 : vector<2x1xf32> to vector<1x2x1xf32>
      %cst_39 = arith.constant dense<0.000000e+00> : vector<1xf32>
      %68 = vector.multi_reduction <add>, %67, %cst_39 [1, 2] : vector<1x2x1xf32> to vector<1xf32>
      %69 = vector.shape_cast %68 : vector<1xf32> to vector<1x1x1xf32>
      %70 = vector.extract %69[0, 0, 0] : f32 from vector<1x1x1xf32>
      %c0_40 = arith.constant 0 : index
      %c0_41 = arith.constant 0 : index
      %71 = vector.load %arg2[%c0_40, %c0_41] : memref<4x2xf32, #tpu.memory_space<vmem>>, vector<4x2xf32>
      %72 = vector.extract_strided_slice %71 {offsets = [0, 0], sizes = [2, 2], strides = [1, 1]} : vector<4x2xf32> to vector<2x2xf32>
      %73 = vector.extract_strided_slice %71 {offsets = [2, 0], sizes = [2, 2], strides = [1, 1]} : vector<4x2xf32> to vector<2x2xf32>
      %74 = math.log %72 : vector<2x2xf32>
      %cst_42 = arith.constant -1.000000e+02 : f32
      %75 = vector.broadcast %cst_42 : f32 to vector<2x2xf32>
      %76 = arith.maximumf %74, %75 : vector<2x2xf32>
      %cst_43 = arith.constant 1.000000e+00 : f32
      %77 = vector.broadcast %cst_43 : f32 to vector<2x2xf32>
      %78 = arith.subf %77, %72 : vector<2x2xf32>
      %79 = math.log %78 : vector<2x2xf32>
      %cst_44 = arith.constant -1.000000e+02 : f32
      %80 = vector.broadcast %cst_44 : f32 to vector<2x2xf32>
      %81 = arith.maximumf %79, %80 : vector<2x2xf32>
      %82 = arith.mulf %73, %76 : vector<2x2xf32>
      %cst_45 = arith.constant 1.000000e+00 : f32
      %83 = vector.broadcast %cst_45 : f32 to vector<2x2xf32>
      %84 = arith.subf %83, %73 : vector<2x2xf32>
      %85 = arith.mulf %84, %81 : vector<2x2xf32>
      %86 = arith.addf %82, %85 : vector<2x2xf32>
      %cst_46 = arith.constant 0.000000e+00 : f32
      %87 = vector.broadcast %cst_46 : f32 to vector<2x2xf32>
      %88 = arith.subf %87, %86 : vector<2x2xf32>
      %89 = vector.shape_cast %88 : vector<2x2xf32> to vector<1x2x2xf32>
      %cst_47 = arith.constant dense<0.000000e+00> : vector<1xf32>
      %90 = vector.multi_reduction <add>, %89, %cst_47 [1, 2] : vector<1x2x2xf32> to vector<1xf32>
      %91 = vector.shape_cast %90 : vector<1xf32> to vector<1x1x1xf32>
      %92 = vector.extract %91[0, 0, 0] : f32 from vector<1x1x1xf32>
      %cst_48 = arith.constant 4.000000e+00 : f32
      %93 = arith.divf %92, %cst_48 : f32
      %94 = tpu.iota {dimensions = array<i32: 2>} : vector<1x8x128xi32>
      %c0_i32_49 = arith.constant 0 : i32
      %95 = vector.broadcast %c0_i32_49 : i32 to vector<1x8x128xi32>
      %96 = arith.cmpi eq, %94, %95 : vector<1x8x128xi32>
      %c1_i32_50 = arith.constant 1 : i32
      %97 = vector.broadcast %c1_i32_50 : i32 to vector<1x8x128xi32>
      %98 = arith.cmpi eq, %94, %97 : vector<1x8x128xi32>
      %cst_51 = arith.constant 0.000000e+00 : f32
      %99 = vector.broadcast %93 : f32 to vector<1x8x128xf32>
      %100 = vector.broadcast %cst_51 : f32 to vector<1x8x128xf32>
      %101 = arith.select %98, %99, %100 : vector<1x8x128xi1>, vector<1x8x128xf32>
      %102 = vector.broadcast %70 : f32 to vector<1x8x128xf32>
      %103 = arith.select %96, %102, %101 : vector<1x8x128xi1>, vector<1x8x128xf32>
      %c0_52 = arith.constant 0 : index
      %c0_53 = arith.constant 0 : index
      %c0_54 = arith.constant 0 : index
      %104 = vector.load %arg5[%c0_52, %c0_53, %c0_54] : memref<1x8x128xf32, #tpu.memory_space<vmem>>, vector<1x8x128xf32>
      tpu.vector_store %arg5[%c0_52, %c0_53, %c0_54], %103 {strides = array<i32>} : memref<1x8x128xf32, #tpu.memory_space<vmem>>, vector<1x8x128xf32>,
    } else {
    }
    return
  }
  func.func @transform_0(%arg0: i32, %arg1: i32) -> (i32, i32) {
    %c0_i32 = arith.constant 0 : i32
    %c0_i32_0 = arith.constant 0 : i32
    %c0_i32_1 = arith.constant 0 : i32
    return %c0_i32, %c0_i32_0 : i32, i32
  }
  func.func @transform_1(%arg0: i32, %arg1: i32) -> (i32, i32) {
    %c1_i32 = arith.constant 1 : i32
    %0 = arith.muli %arg0, %c1_i32 : i32
    %1 = arith.addi %0, %arg1 : i32
    %c0_i32 = arith.constant 0 : i32
    %2 = arith.minsi %1, %c0_i32 : i32
    %c0_i32_0 = arith.constant 0 : i32
    %c0_i32_1 = arith.constant 0 : i32
    return %2, %c0_i32_0 : i32, i32
  }
  func.func @transform_2(%arg0: i32, %arg1: i32) -> (i32, i32) {
    %c1_i32 = arith.constant 1 : i32
    %0 = arith.muli %arg0, %c1_i32 : i32
    %1 = arith.addi %0, %arg1 : i32
    %c0_i32 = arith.constant 0 : i32
    %2 = arith.minsi %1, %c0_i32 : i32
    %c0_i32_0 = arith.constant 0 : i32
    %c0_i32_1 = arith.constant 0 : i32
    return %2, %c0_i32_0 : i32, i32
  }
  func.func @transform_3(%arg0: i32, %arg1: i32) -> (i32, i32, i32) {
    %c0_i32 = arith.constant 0 : i32
    %c0_i32_0 = arith.constant 0 : i32
    %c0_i32_1 = arith.constant 0 : i32
    return %arg0, %c0_i32, %c0_i32_0 : i32, i32, i32
  }
}

</mosaic_0001>

<llo_original>
// kernel: tpu_custom_call.1
$region0: #{tpu_custom_call.1}
  #allocation0 [shape = 'u32[]', space=smem, size = 0x4, offset = 0x4, fixed_abs, tag = 'smem constant byte address 0x4 - core index']
  #allocation1 [shape = 'u32[144,128]{1,0:T(1,128)}', space=vmem, size = 0x12000, scoped, tag = 'internal scratch']
  #allocation2 [shape = 'f32[2,1]{1,0:T(2,128)}', space=vmem, size = 0x400, scoped, tag = 'scratch operand']
  %s0 = inlined_call_operand.vmem [shape: f32[4,2], index: 0, kind: input, shape index: {}]
  %s1 = inlined_call_operand.hbm [shape: f32[2,1024], index: 1, kind: input, shape index: {}]
  %s2 = inlined_call_operand.hbm [shape: f32[2,1024], index: 2, kind: input, shape index: {}]
  %s3 = inlined_call_operand.hbm [shape: f32[1,8,128], index: 3, kind: output, shape index: {}]
  %s4 = sld [smem:[#allocation0]]
  $region38: #{tpu_custom_call.1} parent=0
    _
  %s6 = ssub.s32 1, %s4
  %s7 = scalar_select 0, %s6, %s4
  $region1: #{tpu_custom_call.1} parent=0
    #allocation3 [shape = 'u8[8192]{0}', space=vmem, size = 0x2000, scoped, tag = 'input window, operand 1, single buffered']
    #allocation4 [shape = 's32[1]{0}', space=sflag, size = 0x4, scoped, tag = 'scoped memory for tpu_custom_call.1']
    #allocation5 [shape = 's32[1]{0}', space=sflag, size = 0x4, scoped, tag = 'scoped memory for tpu_custom_call.1']
    #allocation6 [shape = 'u8[8192]{0}', space=vmem, size = 0x2000, scoped, tag = 'input window, operand 2, single buffered']
    #allocation7 [shape = 's32[1]{0}', space=sflag, size = 0x4, scoped, tag = 'scoped memory for tpu_custom_call.1']
    #allocation8 [shape = 'u8[4096]{0}', space=vmem, size = 0x1000, scoped, tag = 'output window, operand 0, single buffered']
    %8 = vsyncpa [#allocation4], 0
    %9 = vsyncpa [#allocation7], 0
    %10 = vsyncpa [#allocation5], 0
    // Predicated region
    $region2: #{tpu_custom_call.1} parent=1 // pred_check
      _
    $region3: #{tpu_custom_call.1} parent=1 // pred_check_branch
      %12 = sbr.rel (0) target = $region5
    $region4: #{tpu_custom_call.1} parent=1 // pred_region
      _
    $region5: #{tpu_custom_call.1} parent=1 // pred_fallthru
      _
    // Predicated region
    $region6: #{tpu_custom_call.1} parent=1 // pred_check
      _
    $region7: #{tpu_custom_call.1} parent=1 // pred_check_branch
      %14 = sbr.rel (0) target = $region9
    $region8: #{tpu_custom_call.1} parent=1 // pred_region
      %s15 = sadd.s32 0, 0
      %p16 = scmp.lt.s32.totalorder %s15, 0
      %s17 = scalar_select %p16, %s15, 0
      %s19 = ssub.s32 256, 256
      %20 = vsyncadd [#allocation4], %s19
      %s21 = smul.addr %s17, 8
      %s22 = smul.addr %s21, 32
      %s23 = scalar_lea.hbm %s1, %s22
      %s25 = sshll.u32 [#allocation3], 4
      %s26 = int_to_ptr.vmem [resolvable:$true] %s25
      %28 = dma.hbm_to_vmem [thread:$0]  %s23, 256, %s26, [#allocation4]
    $region9: #{tpu_custom_call.1} parent=1 // pred_fallthru
      _
    // Predicated region
    $region10: #{tpu_custom_call.1} parent=1 // pred_check
      _
    $region11: #{tpu_custom_call.1} parent=1 // pred_check_branch
      %30 = sbr.rel (0) target = $region13
    $region12: #{tpu_custom_call.1} parent=1 // pred_region
      %s31 = sadd.s32 0, 0
      %p32 = scmp.lt.s32.totalorder %s31, 0
      %s33 = scalar_select %p32, %s31, 0
      %s35 = ssub.s32 256, 256
      %36 = vsyncadd [#allocation7], %s35
      %s37 = smul.addr %s33, 8
      %s38 = smul.addr %s37, 32
      %s39 = scalar_lea.hbm %s2, %s38
      %s41 = sshll.u32 [#allocation6], 4
      %s42 = int_to_ptr.vmem [resolvable:$true] %s41
      %44 = dma.hbm_to_vmem [thread:$0]  %s39, 256, %s42, [#allocation7]
    $region13: #{tpu_custom_call.1} parent=1 // pred_fallthru
      _
    // Predicated region
    $region14: #{tpu_custom_call.1} parent=1 // pred_check
      _
    $region15: #{tpu_custom_call.1} parent=1 // pred_check_branch
      %46 = sbr.rel (0) target = $region17
    $region16: #{tpu_custom_call.1} parent=1 // pred_region
      %47 = dma.done [#allocation4], 256
    $region17: #{tpu_custom_call.1} parent=1 // pred_fallthru
      _
    // Predicated region
    $region18: #{tpu_custom_call.1} parent=1 // pred_check
      _
    $region19: #{tpu_custom_call.1} parent=1 // pred_check_branch
      %49 = sbr.rel (0) target = $region21
    $region20: #{tpu_custom_call.1} parent=1 // pred_region
      %50 = dma.done [#allocation7], 256
    $region21: #{tpu_custom_call.1} parent=1 // pred_fallthru
      _
    %s51 = sadd.s32 0, 0
    %p52 = scmp.lt.s32.totalorder %s51, 0
    %s53 = scalar_select %p52, %s51, 0
    %s54 = sadd.s32 0, 0
    %p55 = scmp.lt.s32.totalorder %s54, 0
    %s56 = scalar_select %p55, %s54, 0
    %p57 = scmp.eq.s32.totalorder 0, 0
    // Predicated region
    $region22: #{tpu_custom_call.1} parent=1 // pred_check
      %p58 = pneg %p57
    $region23: #{tpu_custom_call.1} parent=1 // pred_check_branch
      %60 = sbr.rel (%p58) target = $region25
    $region24: #{tpu_custom_call.1} parent=1 // pred_region
      %vm61 = vcmask 1024
      %62 = vst.msk [vmem:[#allocation2] sm:$0x3] %vm61, 0.0
    $region25: #{tpu_custom_call.1} parent=1 // pred_fallthru
      _
    %v63 = vld [vmem:[#allocation3] sm:$0x3]
    %v64 = vld [vmem:[#allocation3 + $0x2] sm:$0x3]
    %v65 = vadd.f32 %v63, %v64
    %v66 = vld [vmem:[#allocation3 + $0x4] sm:$0x3]
    %v67 = vadd.f32 %v65, %v66
    %v68 = vld [vmem:[#allocation3 + $0x6] sm:$0x3]
    %v69 = vadd.f32 %v67, %v68
    %v70 = vld [vmem:[#allocation3 + $0x8] sm:$0x3]
    %v71 = vadd.f32 %v69, %v70
    %v72 = vld [vmem:[#allocation3 + $0xa] sm:$0x3]
    %v73 = vadd.f32 %v71, %v72
    %v74 = vld [vmem:[#allocation3 + $0xc] sm:$0x3]
    %v75 = vadd.f32 %v73, %v74
    %v76 = vld [vmem:[#allocation3 + $0xe] sm:$0x3]
    %v77 = vadd.f32 %v75, %v76
    %v78 = vmul.f32 %v77, 0.125
    %v79 = vld [vmem:[#allocation6] sm:$0x3]
    %v80 = vld [vmem:[#allocation6 + $0x2] sm:$0x3]
    %v81 = vadd.f32 %v79, %v80
    %v82 = vld [vmem:[#allocation6 + $0x4] sm:$0x3]
    %v83 = vadd.f32 %v81, %v82
    %v84 = vld [vmem:[#allocation6 + $0x6] sm:$0x3]
    %v85 = vadd.f32 %v83, %v84
    %v86 = vld [vmem:[#allocation6 + $0x8] sm:$0x3]
    %v87 = vadd.f32 %v85, %v86
    %v88 = vld [vmem:[#allocation6 + $0xa] sm:$0x3]
    %v89 = vadd.f32 %v87, %v88
    %v90 = vld [vmem:[#allocation6 + $0xc] sm:$0x3]
    %v91 = vadd.f32 %v89, %v90
    %v92 = vld [vmem:[#allocation6 + $0xe] sm:$0x3]
    %v93 = vadd.f32 %v91, %v92
    %v94 = vmul.f32 %v93, 0.125
    %v95 = vmul.f32 %v78, %v78
    %vm96 = vcmask 1041408
    %v97 = vsel %vm96, %v95, 0.0
    %98 = vadd.xlane.f32.xlu0 %v97
    %v99 = vpop.xlane.xlu0 %98
    %v100 = vrsqrt.pop %v99
    %v101 = vmul.f32 %v99, %v100
    %vm102 = vcmp.eq.f32.partialorder %v99, inf
    %v103 = vsel %vm102, %v99, %v101
    %vm104 = vcmp.eq.f32.partialorder %v99, 0.0
    %v105 = vand.u32 %v99, 2147483648
    %v106 = vsel %vm104, %v105, %v103
    %v107 = vmul.f32 %v94, %v94
    %v108 = vsel %vm96, %v107, 0.0
    %109 = vadd.xlane.f32.xlu0 %v108
    %v110 = vpop.xlane.xlu0 %109
    %v111 = vrsqrt.pop %v110
    %v112 = vmul.f32 %v110, %v111
    %vm113 = vcmp.eq.f32.partialorder %v110, inf
    %v114 = vsel %vm113, %v110, %v112
    %vm115 = vcmp.eq.f32.partialorder %v110, 0.0
    %v116 = vand.u32 %v110, 2147483648
    %v117 = vsel %vm115, %v116, %v114
    %v118 = vsub.f32 100.0, %v117
    %v119 = vand.u32 2147483647, %v118
    %v120 = vadd.f32 %v119, %v106
    %v121 = vmul.f32 %v120, %v120
    %s122 = sadd.s32 0, 0
    %s123 = smul.u32 %s122, 2
    %v124 = vlaneseq
    %v125 = vshrl.u32 %v124, 7
    %v126 = vstv %s123
    %v127 = vadd.s32 %v126, %v125
    %vm128 = vcmp.lt.s32.totalorder %v127, 2
    %v129 = vsel %vm128, %v121, 0.0
    %v130 = vld [vmem:[#allocation2] sm:$0x3]
    %v131 = vadd.f32 %v130, %v129
    %vm132 = vcmask 1024
    %133 = vst.msk [vmem:[#allocation2] sm:$0x3] %vm132, %v131
    // Predicated region
    $region26: #{tpu_custom_call.1} parent=1 // pred_check
      %p134 = pneg %p57
    $region27: #{tpu_custom_call.1} parent=1 // pred_check_branch
      %136 = sbr.rel (%p134) target = $region29
    $region28: #{tpu_custom_call.1} parent=1 // pred_region
      %v137 = vld [vmem:[#allocation2] sm:$0x3]
      %v138 = vsel %vm132, %v137, 0.0
      %139 = vadd.xlane.f32.xlu0 %v138
      %v140 = vpop.xlane.xlu0 %139
      %v141 = vrot.slane %v140, 4
      %v142 = vadd.f32 %v140, %v141
      %v143 = vrot.slane %v142, 2
      %v144 = vadd.f32 %v142, %v143
      %v145 = vrot.slane %v144, 1
      %v146 = vadd.f32 %v144, %v145
      %s147 = vtos %v146
      %v148 = vld [vmem:[%s0] sm:$0xf]
      %v149 = vlog2.pop %v148
      %v150 = vmul.f32 %v149, 0.6931472
      %v151 = vmax.f32 %v150, -100.0
      %v152 = vsub.f32 1.0, %v148
      %v153 = vlog2.pop %v152
      %v154 = vmul.f32 %v153, 0.6931472
      %v155 = vmax.f32 %v154, -100.0
      %v157 = vrot.slane %v151, 6
      %v159 = vmul.f32 %v148, %v157
      %v161 = vrot.slane %v155, 6
      %v163 = vmul.f32 %v152, %v161
      %v164 = vadd.f32 %v159, %v163
      %v165 = vsub.f32 0.0, %v164
      %v167 = vrot.slane %v165, 2
      %vm169 = vcmask 9216
      %v170 = vsel %vm169, %v167, 0.0
      %171 = vadd.xlane.f32.xlu0 %v170
      %v172 = vpop.xlane.xlu0 %171
      %v173 = vrot.slane %v172, 4
      %v174 = vadd.f32 %v172, %v173
      %v175 = vrot.slane %v174, 2
      %v176 = vadd.f32 %v174, %v175
      %v177 = vrot.slane %v176, 1
      %v178 = vadd.f32 %v176, %v177
      %s179 = vtos %v178
      %v180 = vrcp.pop 4.0
      %s181 = vtos %v180
      %s182 = smul.f32 %s179, %s181
      %v183 = vlaneseq
      %v184 = vand.u32 %v183, 127
      %vm185 = vcmp.eq.s32.totalorder %v184, 0
      %vm186 = vcmp.eq.s32.totalorder %v184, 1
      %v187 = vstv %s182
      %v188 = vsel %vm186, %v187, 0.0
      %v189 = vstv %s147
      %v190 = vsel %vm185, %v189, %v188
      %191 = vst [vmem:[#allocation8] sm:$0xff] %v190
    $region29: #{tpu_custom_call.1} parent=1 // pred_fallthru
      _
    // Predicated region
    $region30: #{tpu_custom_call.1} parent=1 // pred_check
      _
    $region31: #{tpu_custom_call.1} parent=1 // pred_check_branch
      %193 = sbr.rel (0) target = $region33
    $region32: #{tpu_custom_call.1} parent=1 // pred_region
      %s195 = ssub.s32 128, 128
      %196 = vsyncadd [#allocation5], %s195
      %s198 = sshll.u32 [#allocation8], 4
      %s199 = int_to_ptr.vmem [resolvable:$true] %s198
      %201 = dma.vmem_to_hbm [thread:$0]  %s199, 128, %s3, [#allocation5]
    $region33: #{tpu_custom_call.1} parent=1 // pred_fallthru
      _
    // Predicated region
    $region34: #{tpu_custom_call.1} parent=1 // pred_check
      _
    $region35: #{tpu_custom_call.1} parent=1 // pred_check_branch
      %203 = sbr.rel (0) target = $region37
    $region36: #{tpu_custom_call.1} parent=1 // pred_region
      %204 = dma.done [#allocation5], 128
    $region37: #{tpu_custom_call.1} parent=1 // pred_fallthru
      _
    %205 = vsyncpa [#allocation4], 1
    %206 = vsyncpa [#allocation7], 1
    %207 = vsyncpa [#allocation5], 1

</llo_original>
